<compile_context>
chip_gen: v5e
topology: v5e:2x2
jax: 0.10.0
libtpu: 0.0.40
codegen_flags: <defaults>
</compile_context>

<pallas_src>
import jax
import jax.numpy as jnp
from jax.experimental import pallas as pl
from jax.experimental.pallas import tpu as pltpu

_LANE = 128     # vreg lane width
_SUBLANE = 8    # f32 sublane height


def _round_up(x, m):
    return ((x + m - 1) // m) * m


# ---------------------------------------------------------------------------
# Kernel
# ---------------------------------------------------------------------------
def encoder_kernel(x_ref, w1_ref, b1_ref, wh_ref, bh_ref, out_ref):
    """One batch tile: hidden layer + fused (mu | sigma | pad) head."""
    # hidden = relu(x @ W1^T + b1), f32 accumulation on the MXU.
    h = jnp.dot(x_ref[...], w1_ref[...],
                preferred_element_type=jnp.float32) + b1_ref[...]
    h = jnp.maximum(h, 0.0)
    # Fused heads: one lane-dense [tm, Np] matmul covering [mu | sigma | 0-pad].
    h = h.astype(wh_ref.dtype)          # no-op for f32; enables bf16 MXU path
    out_ref[...] = (jnp.dot(h, wh_ref[...],
                            preferred_element_type=jnp.float32)
                    + bh_ref[...]).astype(out_ref.dtype)


# ---------------------------------------------------------------------------
# One-time parameter prep (parameter-load time, NOT per forward call)
# ---------------------------------------------------------------------------
def encoder_prepare_params(w1, b1, wmu, bmu, wsig, bsig,
                           compute_dtype=jnp.float32):
    """PyTorch layout in: W=[out,in], b=[out].

    Returns ((w1t [D,Hp], b1 [1,Hp], w_head [Hp,Np], b_head [1,Np]), L) with
    Hp = H rounded up to 128 and Np = 2L rounded up to 128.  All padding is
    zeros, which is exact for relu + the fused head.
    """
    H, D = w1.shape
    L = wmu.shape[0]
    assert wmu.shape == (L, H) and wsig.shape == (L, H)

    Hp = _round_up(H, _LANE)
    Np = _round_up(2 * L, _LANE)

    w1t = jnp.zeros((D, Hp), compute_dtype)
    w1t = w1t.at[:, :H].set(jnp.asarray(w1, compute_dtype).T)

    b1r = jnp.zeros((1, Hp), jnp.float32)
    b1r = b1r.at[0, :H].set(jnp.asarray(b1, jnp.float32))

    w_head = jnp.zeros((Hp, Np), compute_dtype)
    w_head = w_head.at[:H, :L].set(jnp.asarray(wmu, compute_dtype).T)
    w_head = w_head.at[:H, L:2 * L].set(jnp.asarray(wsig, compute_dtype).T)

    b_head = jnp.zeros((1, Np), jnp.float32)
    b_head = b_head.at[0, :L].set(jnp.asarray(bmu, jnp.float32))
    b_head = b_head.at[0, L:2 * L].set(jnp.asarray(bsig, jnp.float32))

    return (w1t, b1r, w_head, b_head), L


# ---------------------------------------------------------------------------
# Chip-aware sizing helpers
# ---------------------------------------------------------------------------
def _chip_config():
    """(vmem budget for tile sizing, vmem_limit ceiling, TensorCores/chip)."""
    kind = ""
    try:
        kind = jax.devices()[0].device_kind.lower()
    except Exception:
        pass
    vmem_cap = None
    try:
        vmem_cap = int(getattr(pltpu.get_tpu_info(), "vmem_capacity_bytes", 0))
    except Exception:
        vmem_cap = None
    if not vmem_cap:
        vmem_cap = (64 << 20) if "v7" in kind else (128 << 20)

    num_tc = 2 if ("v7" in kind or "v4" in kind or "v5p" in kind) else 1
    # 48 MiB ceiling on v7x (64 MiB physical), ~100 MiB on v5e/v6e (128 MiB).
    limit_cap = min(max(vmem_cap - (16 << 20), 32 << 20), 100 << 20)
    budget = limit_cap - (8 << 20)
    return budget, limit_cap, num_tc


def _vmem_bytes(tm, d, hp, np_cols, itemsize):
    io = 2 * tm * (d * itemsize + np_cols * 4)                # dbl-buffered x/out tiles
    w = 2 * ((d * hp + hp * np_cols) * itemsize + (hp + np_cols) * 4)  # resident weights
    live = tm * (hp + np_cols) * 4                            # f32 hidden + head accum
    return io + w + live


def _pick_tm(batch, d, hp, np_cols, itemsize, sublane, num_tc, budget):
    """Largest sublane-aligned batch tile (<=1024) fitting the VMEM budget.
    On multi-TC chips, shrink so the step count is a multiple of the TC count."""
    b_al = _round_up(batch, sublane)
    tm = min(b_al, 1024)
    tm = _round_up(tm, sublane)
    while tm > sublane and _vmem_bytes(tm, d, hp, np_cols, itemsize) > budget:
        tm -= sublane
    tm = max(tm, sublane)
    if num_tc > 1:
        steps = -(-b_al // tm)
        if steps % num_tc:
            steps = _round_up(steps, num_tc)
            tm_even = _round_up(-(-b_al // steps), sublane)
            tm = max(min(tm, tm_even), sublane)
    return tm


# ---------------------------------------------------------------------------
# Forward wrapper
# ---------------------------------------------------------------------------
def encoder_forward(x, params, latent_dim):
    """x: [B, input_dim]; params from encoder_prepare_params."""
    w1t, b1r, w_head, b_head = params
    B, D = x.shape
    Hp = w1t.shape[1]
    Np = w_head.shape[1]
    L = latent_dim

    ct = w1t.dtype
    itemsize = jnp.dtype(ct).itemsize
    sublane = max(_SUBLANE, 32 // itemsize)     # 8 for f32, 16 for bf16

    budget, limit_cap, num_tc = _chip_config()
    tm = _pick_tm(B, D, Hp, Np, itemsize, sublane, num_tc, budget)
    Bp = _round_up(B, tm)                       # single pad, folded with tile alignment
    grid = (Bp // tm,)

    xp = x if x.dtype == ct else x.astype(ct)
    if Bp != B:
        xp = jnp.pad(xp, ((0, Bp - B), (0, 0)))

    vmem_est = _vmem_bytes(tm, D, Hp, Np, itemsize)
    cost = pl.CostEstimate(
        flops=2 * Bp * (D * Hp + Hp * Np),
        transcendentals=0,
        bytes_accessed=(itemsize * (Bp * D + D * Hp + Hp * Np)
                        + 4 * (Hp + Np + Bp * Np)),
    )

    out = pl.pallas_call(
        encoder_kernel,
        out_shape=jax.ShapeDtypeStruct((Bp, Np), jnp.float32),
        grid_spec=pltpu.PrefetchScalarGridSpec(
            num_scalar_prefetch=0,
            grid=grid,
            in_specs=[
                pl.BlockSpec((tm, D), lambda i: (i, 0)),     # x batch tile
                pl.BlockSpec((D, Hp), lambda i: (0, 0)),     # W1^T (resident, lane-padded)
                pl.BlockSpec((1, Hp), lambda i: (0, 0)),     # b1   (resident)
                pl.BlockSpec((Hp, Np), lambda i: (0, 0)),    # fused [mu|sigma] head W
                pl.BlockSpec((1, Np), lambda i: (0, 0)),     # fused head bias
            ],
            out_specs=pl.BlockSpec((tm, Np), lambda i: (i, 0)),   # [mu|sigma|pad]
        ),
        compiler_params=pltpu.CompilerParams(
            dimension_semantics=("parallel",),
            vmem_limit_bytes=int(min(max(vmem_est + (8 << 20), 16 << 20),
                                     limit_cap)),
        ),
        cost_estimate=cost,
    )(xp, w1t, b1r, w_head, b_head)

    mu = out[:B, :L]
    sigma = out[:B, L:2 * L]
    return mu, sigma


def encoder_ref(x, w1, b1, wmu, bmu, wsig, bsig):
    h = jnp.maximum(x @ w1.T + b1, 0.0)
    return h @ wmu.T + bmu, h @ wsig.T + bsig


# ---------------------------------------------------------------------------
# Self-test
# ---------------------------------------------------------------------------
if __name__ == "__main__":
    input_dim, hidden_dim, latent_dim = 32, 64, 16

    key = jax.random.PRNGKey(0)
    kx, k1, k2, k3, k4, k5, k6 = jax.random.split(key, 7)

    # PyTorch Linear shapes: W=[out,in], b=[out].
    w1 = jax.random.normal(k1, (hidden_dim, input_dim), jnp.float32) * 0.1
    b1 = jax.random.normal(k2, (hidden_dim,), jnp.float32) * 0.1
    wmu = jax.random.normal(k3, (latent_dim, hidden_dim), jnp.float32) * 0.1
    bmu = jax.random.normal(k4, (latent_dim,), jnp.float32) * 0.1
    wsig = jax.random.normal(k5, (latent_dim, hidden_dim), jnp.float32) * 0.1
    bsig = jax.random.normal(k6, (latent_dim,), jnp.float32) * 0.1

    # One-time prep: transpose, fuse mu/sigma heads, pad H and 2L to 128 lanes.
    params, L = encoder_prepare_params(w1, b1, wmu, bmu, wsig, bsig)

    ok = True
    for B in (256, 50):     # aligned batch + ragged batch (exercises single pad)
        x = jax.random.normal(kx, (B, input_dim), dtype=jnp.float32)
        mu, sigma = encoder_forward(x, params, L)
        jax.block_until_ready((mu, sigma))
        mu_ref, sig_ref = encoder_ref(x, w1, b1, wmu, bmu, wsig, bsig)
        ok &= mu.shape == (B, latent_dim) and sigma.shape == (B, latent_dim)
        ok &= bool(jnp.allclose(mu, mu_ref, atol=1e-5, rtol=1e-5))
        ok &= bool(jnp.allclose(sigma, sig_ref, atol=1e-5, rtol=1e-5))

    assert ok
    print("KERNEL_OK")
</pallas_src>

<mosaic_0001>
module attributes {stable_mosaic.version = 11 : i64} {
  func.func @encoder_kernel(%arg0: i32, %arg1: memref<256x32xf32, #tpu.memory_space<vmem>>, %arg2: memref<32x128xf32, #tpu.memory_space<vmem>>, %arg3: memref<1x128xf32, #tpu.memory_space<vmem>>, %arg4: memref<128x128xf32, #tpu.memory_space<vmem>>, %arg5: memref<1x128xf32, #tpu.memory_space<vmem>>, %arg6: memref<256x128xf32, #tpu.memory_space<vmem>>) attributes {dimension_semantics = [#tpu.dimension_semantics<parallel>], iteration_bounds = array<i64: 1>, scalar_prefetch = 0 : i64, scratch_operands = 0 : i64, tpu.core_type = #tpu.core_type<tc>, window_params = [{transform_indices = @transform_0, window_bounds = array<i64: 256, 32>}, {pipeline_mode = #tpu.pipeline_mode<synchronous>, transform_indices = @transform_1, window_bounds = array<i64: 32, 128>}, {pipeline_mode = #tpu.pipeline_mode<synchronous>, transform_indices = @transform_2, window_bounds = array<i64: 1, 128>}, {pipeline_mode = #tpu.pipeline_mode<synchronous>, transform_indices = @transform_3, window_bounds = array<i64: 128, 128>}, {pipeline_mode = #tpu.pipeline_mode<synchronous>, transform_indices = @transform_4, window_bounds = array<i64: 1, 128>}, {transform_indices = @transform_5, window_bounds = array<i64: 256, 128>}]} {
    %c0 = arith.constant 0 : index
    %c0_0 = arith.constant 0 : index
    %0 = vector.load %arg1[%c0, %c0_0] : memref<256x32xf32, #tpu.memory_space<vmem>>, vector<256x32xf32>
    %c0_1 = arith.constant 0 : index
    %c0_2 = arith.constant 0 : index
    %1 = vector.load %arg2[%c0_1, %c0_2] : memref<32x128xf32, #tpu.memory_space<vmem>>, vector<32x128xf32>
    %cst = arith.constant dense<0.000000e+00> : vector<256x128xf32>
    %2 = tpu.matmul %0, %1, %cst {dimension_numbers = #tpu.dot_dimension_numbers<[1], [0], [0], [1], [0, 0, 1, 1], [], []>} : vector<256x32xf32>, vector<32x128xf32>, vector<256x128xf32> -> vector<256x128xf32>
    %c0_3 = arith.constant 0 : index
    %c0_4 = arith.constant 0 : index
    %3 = vector.load %arg3[%c0_3, %c0_4] : memref<1x128xf32, #tpu.memory_space<vmem>>, vector<1x128xf32>
    %4 = vector.broadcast %3 : vector<1x128xf32> to vector<256x128xf32>
    %5 = arith.addf %2, %4 : vector<256x128xf32>
    %cst_5 = arith.constant 0.000000e+00 : f32
    %6 = vector.broadcast %cst_5 : f32 to vector<256x128xf32>
    %7 = arith.maximumf %5, %6 : vector<256x128xf32>
    %c0_6 = arith.constant 0 : index
    %c0_7 = arith.constant 0 : index
    %8 = vector.load %arg4[%c0_6, %c0_7] : memref<128x128xf32, #tpu.memory_space<vmem>>, vector<128x128xf32>
    %cst_8 = arith.constant dense<0.000000e+00> : vector<256x128xf32>
    %9 = tpu.matmul %7, %8, %cst_8 {dimension_numbers = #tpu.dot_dimension_numbers<[1], [0], [0], [1], [0, 0, 1, 1], [], []>} : vector<256x128xf32>, vector<128x128xf32>, vector<256x128xf32> -> vector<256x128xf32>
    %c0_9 = arith.constant 0 : index
    %c0_10 = arith.constant 0 : index
    %10 = vector.load %arg5[%c0_9, %c0_10] : memref<1x128xf32, #tpu.memory_space<vmem>>, vector<1x128xf32>
    %11 = vector.broadcast %10 : vector<1x128xf32> to vector<256x128xf32>
    %12 = arith.addf %9, %11 : vector<256x128xf32>
    %c0_11 = arith.constant 0 : index
    %c0_12 = arith.constant 0 : index
    %13 = vector.load %arg6[%c0_11, %c0_12] : memref<256x128xf32, #tpu.memory_space<vmem>>, vector<256x128xf32>
    tpu.vector_store %arg6[%c0_11, %c0_12], %12 {strides = array<i32>} : memref<256x128xf32, #tpu.memory_space<vmem>>, vector<256x128xf32>,
    return
  }
  func.func @transform_0(%arg0: i32) -> (i32, i32) {
    %c0_i32 = arith.constant 0 : i32
    %c0_i32_0 = arith.constant 0 : i32
    return %arg0, %c0_i32 : i32, i32
  }
  func.func @transform_1(%arg0: i32) -> (i32, i32) {
    %c0_i32 = arith.constant 0 : i32
    %c0_i32_0 = arith.constant 0 : i32
    %c0_i32_1 = arith.constant 0 : i32
    return %c0_i32, %c0_i32_0 : i32, i32
  }
  func.func @transform_2(%arg0: i32) -> (i32, i32) {
    %c0_i32 = arith.constant 0 : i32
    %c0_i32_0 = arith.constant 0 : i32
    %c0_i32_1 = arith.constant 0 : i32
    return %c0_i32, %c0_i32_0 : i32, i32
  }
  func.func @transform_3(%arg0: i32) -> (i32, i32) {
    %c0_i32 = arith.constant 0 : i32
    %c0_i32_0 = arith.constant 0 : i32
    %c0_i32_1 = arith.constant 0 : i32
    return %c0_i32, %c0_i32_0 : i32, i32
  }
  func.func @transform_4(%arg0: i32) -> (i32, i32) {
    %c0_i32 = arith.constant 0 : i32
    %c0_i32_0 = arith.constant 0 : i32
    %c0_i32_1 = arith.constant 0 : i32
    return %c0_i32, %c0_i32_0 : i32, i32
  }
  func.func @transform_5(%arg0: i32) -> (i32, i32) {
    %c0_i32 = arith.constant 0 : i32
    %c0_i32_0 = arith.constant 0 : i32
    return %arg0, %c0_i32 : i32, i32
  }
}

</mosaic_0001>

<llo_original>
// kernel: tpu_custom_call.1
$region0: #{tpu_custom_call.1}
  #allocation0 [shape = 'u32[]', space=smem, size = 0x4, offset = 0x4, fixed_abs, tag = 'smem constant byte address 0x4 - core index']
  #allocation1 [shape = 'u32[72,128]{1,0:T(1,128)}', space=vmem, size = 0x9000, scoped, tag = 'internal scratch']
  %s0 = inlined_call_operand.vmem [shape: f32[256,32], index: 0, kind: input, shape index: {}]
  %s1 = inlined_call_operand.vmem [shape: f32[32,128], index: 1, kind: input, shape index: {}]
  %s2 = inlined_call_operand.vmem [shape: f32[1,128], index: 2, kind: input, shape index: {}]
  %s3 = inlined_call_operand.vmem [shape: f32[128,128], index: 3, kind: input, shape index: {}]
  %s4 = inlined_call_operand.vmem [shape: f32[1,128], index: 4, kind: input, shape index: {}]
  %s5 = inlined_call_operand.hbm [shape: f32[256,128], index: 5, kind: output, shape index: {}]
  %s6 = sld [smem:[#allocation0]]
  $region30: #{tpu_custom_call.1} parent=0
    _
  %s8 = ssub.s32 1, %s6
  %s9 = scalar_select 0, %s8, %s6
  $region1: #{tpu_custom_call.1} parent=0
    #allocation2 [shape = 'u8[131072]{0}', space=vmem, size = 0x20000, scoped, tag = 'output window, operand 0, single buffered']
    #allocation3 [shape = 's32[1]{0}', space=sflag, size = 0x4, scoped, tag = 'scoped memory for tpu_custom_call.1']
    %10 = vsyncpa [#allocation3], 0
    // Predicated region
    $region2: #{tpu_custom_call.1} parent=1 // pred_check
      _
    $region3: #{tpu_custom_call.1} parent=1 // pred_check_branch
      %12 = sbr.rel (0) target = $region5
    $region4: #{tpu_custom_call.1} parent=1 // pred_region
      _
    $region5: #{tpu_custom_call.1} parent=1 // pred_fallthru
      _
    // Predicated region
    $region6: #{tpu_custom_call.1} parent=1 // pred_check
      _
    $region7: #{tpu_custom_call.1} parent=1 // pred_check_branch
      %14 = sbr.rel (0) target = $region9
    $region8: #{tpu_custom_call.1} parent=1 // pred_region
      _
    $region9: #{tpu_custom_call.1} parent=1 // pred_fallthru
      _
    // Predicated region
    $region10: #{tpu_custom_call.1} parent=1 // pred_check
      _
    $region11: #{tpu_custom_call.1} parent=1 // pred_check_branch
      %16 = sbr.rel (0) target = $region13
    $region12: #{tpu_custom_call.1} parent=1 // pred_region
      _
    $region13: #{tpu_custom_call.1} parent=1 // pred_fallthru
      _
    // Predicated region
    $region14: #{tpu_custom_call.1} parent=1 // pred_check
      _
    $region15: #{tpu_custom_call.1} parent=1 // pred_check_branch
      %18 = sbr.rel (0) target = $region17
    $region16: #{tpu_custom_call.1} parent=1 // pred_region
      _
    $region17: #{tpu_custom_call.1} parent=1 // pred_fallthru
      _
    // Predicated region
    $region18: #{tpu_custom_call.1} parent=1 // pred_check
      _
    $region19: #{tpu_custom_call.1} parent=1 // pred_check_branch
      %20 = sbr.rel (0) target = $region21
    $region20: #{tpu_custom_call.1} parent=1 // pred_region
      _
    $region21: #{tpu_custom_call.1} parent=1 // pred_fallthru
      _
    %v21 = vld [vmem:[%s0] sm:$0xff]
    %v22 = vld [vmem:[%s0 + $0x8] sm:$0xff]
    %v23 = vld [vmem:[%s0 + $0x10] sm:$0xff]
    %v24 = vld [vmem:[%s0 + $0x18] sm:$0xff]
    %v25 = vld [vmem:[%s0 + $0x20] sm:$0xff]
    %v26 = vld [vmem:[%s0 + $0x28] sm:$0xff]
    %v27 = vld [vmem:[%s0 + $0x30] sm:$0xff]
    %v28 = vld [vmem:[%s0 + $0x38] sm:$0xff]
    %v29 = vld [vmem:[%s0 + $0x40] sm:$0xff]
    %v30 = vld [vmem:[%s0 + $0x48] sm:$0xff]
    %v31 = vld [vmem:[%s0 + $0x50] sm:$0xff]
    %v32 = vld [vmem:[%s0 + $0x58] sm:$0xff]
    %v33 = vld [vmem:[%s0 + $0x60] sm:$0xff]
    %v34 = vld [vmem:[%s0 + $0x68] sm:$0xff]
    %v35 = vld [vmem:[%s0 + $0x70] sm:$0xff]
    %v36 = vld [vmem:[%s0 + $0x78] sm:$0xff]
    %v37 = vld [vmem:[%s0 + $0x80] sm:$0xff]
    %v38 = vld [vmem:[%s0 + $0x88] sm:$0xff]
    %v39 = vld [vmem:[%s0 + $0x90] sm:$0xff]
    %v40 = vld [vmem:[%s0 + $0x98] sm:$0xff]
    %v41 = vld [vmem:[%s0 + $0xa0] sm:$0xff]
    %v42 = vld [vmem:[%s0 + $0xa8] sm:$0xff]
    %v43 = vld [vmem:[%s0 + $0xb0] sm:$0xff]
    %v44 = vld [vmem:[%s0 + $0xb8] sm:$0xff]
    %v45 = vld [vmem:[%s0 + $0xc0] sm:$0xff]
    %v46 = vld [vmem:[%s0 + $0xc8] sm:$0xff]
    %v47 = vld [vmem:[%s0 + $0xd0] sm:$0xff]
    %v48 = vld [vmem:[%s0 + $0xd8] sm:$0xff]
    %v49 = vld [vmem:[%s0 + $0xe0] sm:$0xff]
    %v50 = vld [vmem:[%s0 + $0xe8] sm:$0xff]
    %v51 = vld [vmem:[%s0 + $0xf0] sm:$0xff]
    %v52 = vld [vmem:[%s0 + $0xf8] sm:$0xff]
    %v53 = vld [vmem:[%s1] sm:$0xff]
    %v54 = vld [vmem:[%s1 + $0x8] sm:$0xff]
    %v55 = vld [vmem:[%s1 + $0x10] sm:$0xff]
    %v56 = vld [vmem:[%s1 + $0x18] sm:$0xff]
    %v57 = vld [vmem:[%s2] sm:$0x1]
    %v59 = vperm.slane %v57, 0
    %vm61 = vcmask 261120
    %v63 = vsel %vm61, %v21, 0
    %v66 = vsel %vm61, %v22, 0
    %v69 = vsel %vm61, %v23, 0
    %v72 = vsel %vm61, %v24, 0
    %v75 = vsel %vm61, %v25, 0
    %v78 = vsel %vm61, %v26, 0
    %v81 = vsel %vm61, %v27, 0
    %v84 = vsel %vm61, %v28, 0
    %v87 = vsel %vm61, %v29, 0
    %v90 = vsel %vm61, %v30, 0
    %v93 = vsel %vm61, %v31, 0
    %v96 = vsel %vm61, %v32, 0
    %v99 = vsel %vm61, %v33, 0
    %v102 = vsel %vm61, %v34, 0
    %v105 = vsel %vm61, %v35, 0
    %v108 = vsel %vm61, %v36, 0
    %v111 = vsel %vm61, %v37, 0
    %v114 = vsel %vm61, %v38, 0
    %v117 = vsel %vm61, %v39, 0
    %v120 = vsel %vm61, %v40, 0
    %v123 = vsel %vm61, %v41, 0
    %v126 = vsel %vm61, %v42, 0
    %v129 = vsel %vm61, %v43, 0
    %v132 = vsel %vm61, %v44, 0
    %v135 = vsel %vm61, %v45, 0
    %v138 = vsel %vm61, %v46, 0
    %v141 = vsel %vm61, %v47, 0
    %v144 = vsel %vm61, %v48, 0
    %v147 = vsel %vm61, %v49, 0
    %v150 = vsel %vm61, %v50, 0
    %v153 = vsel %vm61, %v51, 0
    %v156 = vsel %vm61, %v52, 0
    %158 = vmatpush.msra.mxu0 0.0
    %159 = vmatpush.msra.mxu0 0.0
    %160 = vmatpush.msra.mxu0 0.0
    %161 = vmatpush.msra.mxu0 0.0
    %162 = vmatpush.msra.mxu0 0.0
    %163 = vmatpush.msra.mxu0 0.0
    %164 = vmatpush.msra.mxu0 0.0
    %165 = vmatpush.msra.mxu0 0.0
    %166 = vmatpush.msra.mxu0 0.0
    %167 = vmatpush.msra.mxu0 0.0
    %168 = vmatpush.msra.mxu0 0.0
    %169 = vmatpush.msra.mxu0 0.0
    %170 = vmatpush.msra.mxu0 %v56
    %171 = vmatpush.msra.mxu0 %v55
    %172 = vmatpush.msra.mxu0 %v54
    %173 = vmatpush.msra.mxu0 %v53
    %174 = vmatmul.f32.gmra.mxu0 %v63
    %v175 = vpop.f32.mrf.mxu0
    %v176 = vadd.f32 %v59, %v175
    %177 = vmatmul.f32.gmra.mxu0 %v66
    %v178 = vpop.f32.mrf.mxu0
    %v179 = vadd.f32 %v59, %v178
    %180 = vmatmul.f32.gmra.mxu0 %v69
    %v181 = vpop.f32.mrf.mxu0
    %v182 = vadd.f32 %v59, %v181
    %183 = vmatmul.f32.gmra.mxu0 %v72
    %v184 = vpop.f32.mrf.mxu0
    %v185 = vadd.f32 %v59, %v184
    %186 = vmatmul.f32.gmra.mxu0 %v75
    %v187 = vpop.f32.mrf.mxu0
    %v188 = vadd.f32 %v59, %v187
    %189 = vmatmul.f32.gmra.mxu0 %v78
    %v190 = vpop.f32.mrf.mxu0
    %v191 = vadd.f32 %v59, %v190
    %192 = vmatmul.f32.gmra.mxu0 %v81
    %v193 = vpop.f32.mrf.mxu0
    %v194 = vadd.f32 %v59, %v193
    %195 = vmatmul.f32.gmra.mxu0 %v84
    %v196 = vpop.f32.mrf.mxu0
    %v197 = vadd.f32 %v59, %v196
    %198 = vmatmul.f32.gmra.mxu0 %v87
    %v199 = vpop.f32.mrf.mxu0
    %v200 = vadd.f32 %v59, %v199
    %201 = vmatmul.f32.gmra.mxu0 %v90
    %v202 = vpop.f32.mrf.mxu0
    %v203 = vadd.f32 %v59, %v202
    %204 = vmatmul.f32.gmra.mxu0 %v93
    %v205 = vpop.f32.mrf.mxu0
    %v206 = vadd.f32 %v59, %v205
    %207 = vmatmul.f32.gmra.mxu0 %v96
    %v208 = vpop.f32.mrf.mxu0
    %v209 = vadd.f32 %v59, %v208
    %210 = vmatmul.f32.gmra.mxu0 %v99
    %v211 = vpop.f32.mrf.mxu0
    %v212 = vadd.f32 %v59, %v211
    %213 = vmatmul.f32.gmra.mxu0 %v102
    %v214 = vpop.f32.mrf.mxu0
    %v215 = vadd.f32 %v59, %v214
    %216 = vmatmul.f32.gmra.mxu0 %v105
    %v217 = vpop.f32.mrf.mxu0
    %v218 = vadd.f32 %v59, %v217
    %219 = vmatmul.f32.gmra.mxu0 %v108
    %v220 = vpop.f32.mrf.mxu0
    %v221 = vadd.f32 %v59, %v220
    %222 = vmatmul.f32.gmra.mxu0 %v111
    %v223 = vpop.f32.mrf.mxu0
    %v224 = vadd.f32 %v59, %v223
    %225 = vmatmul.f32.gmra.mxu0 %v114
    %v226 = vpop.f32.mrf.mxu0
    %v227 = vadd.f32 %v59, %v226
    %228 = vmatmul.f32.gmra.mxu0 %v117
    %v229 = vpop.f32.mrf.mxu0
    %v230 = vadd.f32 %v59, %v229
    %231 = vmatmul.f32.gmra.mxu0 %v120
    %v232 = vpop.f32.mrf.mxu0
    %v233 = vadd.f32 %v59, %v232
    %234 = vmatmul.f32.gmra.mxu0 %v123
    %v235 = vpop.f32.mrf.mxu0
    %v236 = vadd.f32 %v59, %v235
    %237 = vmatmul.f32.gmra.mxu0 %v126
    %v238 = vpop.f32.mrf.mxu0
    %v239 = vadd.f32 %v59, %v238
    %240 = vmatmul.f32.gmra.mxu0 %v129
    %v241 = vpop.f32.mrf.mxu0
    %v242 = vadd.f32 %v59, %v241
    %243 = vmatmul.f32.gmra.mxu0 %v132
    %v244 = vpop.f32.mrf.mxu0
    %v245 = vadd.f32 %v59, %v244
    %246 = vmatmul.f32.gmra.mxu0 %v135
    %v247 = vpop.f32.mrf.mxu0
    %v248 = vadd.f32 %v59, %v247
    %249 = vmatmul.f32.gmra.mxu0 %v138
    %v250 = vpop.f32.mrf.mxu0
    %v251 = vadd.f32 %v59, %v250
    %252 = vmatmul.f32.gmra.mxu0 %v141
    %v253 = vpop.f32.mrf.mxu0
    %v254 = vadd.f32 %v59, %v253
    %255 = vmatmul.f32.gmra.mxu0 %v144
    %v256 = vpop.f32.mrf.mxu0
    %v257 = vadd.f32 %v59, %v256
    %258 = vmatmul.f32.gmra.mxu0 %v147
    %v259 = vpop.f32.mrf.mxu0
    %v260 = vadd.f32 %v59, %v259
    %261 = vmatmul.f32.gmra.mxu0 %v150
    %v262 = vpop.f32.mrf.mxu0
    %v263 = vadd.f32 %v59, %v262
    %264 = vmatmul.f32.gmra.mxu0 %v153
    %v265 = vpop.f32.mrf.mxu0
    %v266 = vadd.f32 %v59, %v265
    %267 = vmatmul.f32.gmra.mxu0 %v156
    %v268 = vpop.f32.mrf.mxu0
    %v269 = vadd.f32 %v59, %v268
    %270 = vdwg.mxu0
    %v271 = vmax.f32 %v176, 0.0
    %v272 = vmax.f32 %v179, 0.0
    %v273 = vmax.f32 %v182, 0.0
    %v274 = vmax.f32 %v185, 0.0
    %v275 = vmax.f32 %v188, 0.0
    %v276 = vmax.f32 %v191, 0.0
    %v277 = vmax.f32 %v194, 0.0
    %v278 = vmax.f32 %v197, 0.0
    %v279 = vmax.f32 %v200, 0.0
    %v280 = vmax.f32 %v203, 0.0
    %v281 = vmax.f32 %v206, 0.0
    %v282 = vmax.f32 %v209, 0.0
    %v283 = vmax.f32 %v212, 0.0
    %v284 = vmax.f32 %v215, 0.0
    %v285 = vmax.f32 %v218, 0.0
    %v286 = vmax.f32 %v221, 0.0
    %v287 = vmax.f32 %v224, 0.0
    %v288 = vmax.f32 %v227, 0.0
    %v289 = vmax.f32 %v230, 0.0
    %v290 = vmax.f32 %v233, 0.0
    %v291 = vmax.f32 %v236, 0.0
    %v292 = vmax.f32 %v239, 0.0
    %v293 = vmax.f32 %v242, 0.0
    %v294 = vmax.f32 %v245, 0.0
    %v295 = vmax.f32 %v248, 0.0
    %v296 = vmax.f32 %v251, 0.0
    %v297 = vmax.f32 %v254, 0.0
    %v298 = vmax.f32 %v257, 0.0
    %v299 = vmax.f32 %v260, 0.0
    %v300 = vmax.f32 %v263, 0.0
    %v301 = vmax.f32 %v266, 0.0
    %v302 = vmax.f32 %v269, 0.0
    %v303 = vld [vmem:[%s3] sm:$0xff]
    %v304 = vld [vmem:[%s3 + $0x8] sm:$0xff]
    %v305 = vld [vmem:[%s3 + $0x10] sm:$0xff]
    %v306 = vld [vmem:[%s3 + $0x18] sm:$0xff]
    %v307 = vld [vmem:[%s3 + $0x20] sm:$0xff]
    %v308 = vld [vmem:[%s3 + $0x28] sm:$0xff]
    %v309 = vld [vmem:[%s3 + $0x30] sm:$0xff]
    %v310 = vld [vmem:[%s3 + $0x38] sm:$0xff]
    %v311 = vld [vmem:[%s3 + $0x40] sm:$0xff]
    %v312 = vld [vmem:[%s3 + $0x48] sm:$0xff]
    %v313 = vld [vmem:[%s3 + $0x50] sm:$0xff]
    %v314 = vld [vmem:[%s3 + $0x58] sm:$0xff]
    %v315 = vld [vmem:[%s3 + $0x60] sm:$0xff]
    %v316 = vld [vmem:[%s3 + $0x68] sm:$0xff]
    %v317 = vld [vmem:[%s3 + $0x70] sm:$0xff]
    %v318 = vld [vmem:[%s3 + $0x78] sm:$0xff]
    %v319 = vld [vmem:[%s4] sm:$0x1]
    %v321 = vperm.slane %v319, 0
    %323 = vmatpush.msra.mxu0 %v318
    %324 = vmatpush.msra.mxu0 %v317
    %325 = vmatpush.msra.mxu0 %v316
    %326 = vmatpush.msra.mxu0 %v315
    %327 = vmatpush.msra.mxu0 %v314
    %328 = vmatpush.msra.mxu0 %v313
    %329 = vmatpush.msra.mxu0 %v312
    %330 = vmatpush.msra.mxu0 %v311
    %331 = vmatpush.msra.mxu0 %v310
    %332 = vmatpush.msra.mxu0 %v309
    %333 = vmatpush.msra.mxu0 %v308
    %334 = vmatpush.msra.mxu0 %v307
    %335 = vmatpush.msra.mxu0 %v306
    %336 = vmatpush.msra.mxu0 %v305
    %337 = vmatpush.msra.mxu0 %v304
    %338 = vmatpush.msra.mxu0 %v303
    %339 = vmatmul.f32.gmra.mxu0 %v271
    %v340 = vpop.f32.mrf.mxu0
    %v341 = vadd.f32 %v321, %v340
    %342 = vmatmul.f32.gmra.mxu0 %v272
    %v343 = vpop.f32.mrf.mxu0
    %v344 = vadd.f32 %v321, %v343
    %345 = vmatmul.f32.gmra.mxu0 %v273
    %v346 = vpop.f32.mrf.mxu0
    %v347 = vadd.f32 %v321, %v346
    %348 = vmatmul.f32.gmra.mxu0 %v274
    %v349 = vpop.f32.mrf.mxu0
    %v350 = vadd.f32 %v321, %v349
    %351 = vmatmul.f32.gmra.mxu0 %v275
    %v352 = vpop.f32.mrf.mxu0
    %v353 = vadd.f32 %v321, %v352
    %354 = vmatmul.f32.gmra.mxu0 %v276
    %v355 = vpop.f32.mrf.mxu0
    %v356 = vadd.f32 %v321, %v355
    %357 = vmatmul.f32.gmra.mxu0 %v277
    %v358 = vpop.f32.mrf.mxu0
    %v359 = vadd.f32 %v321, %v358
    %360 = vmatmul.f32.gmra.mxu0 %v278
    %v361 = vpop.f32.mrf.mxu0
    %v362 = vadd.f32 %v321, %v361
    %363 = vmatmul.f32.gmra.mxu0 %v279
    %v364 = vpop.f32.mrf.mxu0
    %v365 = vadd.f32 %v321, %v364
    %366 = vmatmul.f32.gmra.mxu0 %v280
    %v367 = vpop.f32.mrf.mxu0
    %v368 = vadd.f32 %v321, %v367
    %369 = vmatmul.f32.gmra.mxu0 %v281
    %v370 = vpop.f32.mrf.mxu0
    %v371 = vadd.f32 %v321, %v370
    %372 = vmatmul.f32.gmra.mxu0 %v282
    %v373 = vpop.f32.mrf.mxu0
    %v374 = vadd.f32 %v321, %v373
    %375 = vmatmul.f32.gmra.mxu0 %v283
    %v376 = vpop.f32.mrf.mxu0
    %v377 = vadd.f32 %v321, %v376
    %378 = vmatmul.f32.gmra.mxu0 %v284
    %v379 = vpop.f32.mrf.mxu0
    %v380 = vadd.f32 %v321, %v379
    %381 = vmatmul.f32.gmra.mxu0 %v285
    %v382 = vpop.f32.mrf.mxu0
    %v383 = vadd.f32 %v321, %v382
    %384 = vmatmul.f32.gmra.mxu0 %v286
    %v385 = vpop.f32.mrf.mxu0
    %v386 = vadd.f32 %v321, %v385
    %387 = vmatmul.f32.gmra.mxu0 %v287
    %v388 = vpop.f32.mrf.mxu0
    %v389 = vadd.f32 %v321, %v388
    %390 = vmatmul.f32.gmra.mxu0 %v288
    %v391 = vpop.f32.mrf.mxu0
    %v392 = vadd.f32 %v321, %v391
    %393 = vmatmul.f32.gmra.mxu0 %v289
    %v394 = vpop.f32.mrf.mxu0
    %v395 = vadd.f32 %v321, %v394
    %396 = vmatmul.f32.gmra.mxu0 %v290
    %v397 = vpop.f32.mrf.mxu0
    %v398 = vadd.f32 %v321, %v397
    %399 = vmatmul.f32.gmra.mxu0 %v291
    %v400 = vpop.f32.mrf.mxu0
    %v401 = vadd.f32 %v321, %v400
    %402 = vmatmul.f32.gmra.mxu0 %v292
    %v403 = vpop.f32.mrf.mxu0
    %v404 = vadd.f32 %v321, %v403
    %405 = vmatmul.f32.gmra.mxu0 %v293
    %v406 = vpop.f32.mrf.mxu0
    %v407 = vadd.f32 %v321, %v406
    %408 = vmatmul.f32.gmra.mxu0 %v294
    %v409 = vpop.f32.mrf.mxu0
    %v410 = vadd.f32 %v321, %v409
    %411 = vmatmul.f32.gmra.mxu0 %v295
    %v412 = vpop.f32.mrf.mxu0
    %v413 = vadd.f32 %v321, %v412
    %414 = vmatmul.f32.gmra.mxu0 %v296
    %v415 = vpop.f32.mrf.mxu0
    %v416 = vadd.f32 %v321, %v415
    %417 = vmatmul.f32.gmra.mxu0 %v297
    %v418 = vpop.f32.mrf.mxu0
    %v419 = vadd.f32 %v321, %v418
    %420 = vmatmul.f32.gmra.mxu0 %v298
    %v421 = vpop.f32.mrf.mxu0
    %v422 = vadd.f32 %v321, %v421
    %423 = vmatmul.f32.gmra.mxu0 %v299
    %v424 = vpop.f32.mrf.mxu0
    %v425 = vadd.f32 %v321, %v424
    %426 = vmatmul.f32.gmra.mxu0 %v300
    %v427 = vpop.f32.mrf.mxu0
    %v428 = vadd.f32 %v321, %v427
    %429 = vmatmul.f32.gmra.mxu0 %v301
    %v430 = vpop.f32.mrf.mxu0
    %v431 = vadd.f32 %v321, %v430
    %432 = vmatmul.f32.gmra.mxu0 %v302
    %v433 = vpop.f32.mrf.mxu0
    %v434 = vadd.f32 %v321, %v433
    %435 = vdwg.mxu0
    %436 = vst [vmem:[#allocation2] sm:$0xff] %v341
    %437 = vst [vmem:[#allocation2 + $0x8] sm:$0xff] %v344
    %438 = vst [vmem:[#allocation2 + $0x10] sm:$0xff] %v347
    %439 = vst [vmem:[#allocation2 + $0x18] sm:$0xff] %v350
    %440 = vst [vmem:[#allocation2 + $0x20] sm:$0xff] %v353
    %441 = vst [vmem:[#allocation2 + $0x28] sm:$0xff] %v356
    %442 = vst [vmem:[#allocation2 + $0x30] sm:$0xff] %v359
    %443 = vst [vmem:[#allocation2 + $0x38] sm:$0xff] %v362
    %444 = vst [vmem:[#allocation2 + $0x40] sm:$0xff] %v365
    %445 = vst [vmem:[#allocation2 + $0x48] sm:$0xff] %v368
    %446 = vst [vmem:[#allocation2 + $0x50] sm:$0xff] %v371
    %447 = vst [vmem:[#allocation2 + $0x58] sm:$0xff] %v374
    %448 = vst [vmem:[#allocation2 + $0x60] sm:$0xff] %v377
    %449 = vst [vmem:[#allocation2 + $0x68] sm:$0xff] %v380
    %450 = vst [vmem:[#allocation2 + $0x70] sm:$0xff] %v383
    %451 = vst [vmem:[#allocation2 + $0x78] sm:$0xff] %v386
    %452 = vst [vmem:[#allocation2 + $0x80] sm:$0xff] %v389
    %453 = vst [vmem:[#allocation2 + $0x88] sm:$0xff] %v392
    %454 = vst [vmem:[#allocation2 + $0x90] sm:$0xff] %v395
    %455 = vst [vmem:[#allocation2 + $0x98] sm:$0xff] %v398
    %456 = vst [vmem:[#allocation2 + $0xa0] sm:$0xff] %v401
    %457 = vst [vmem:[#allocation2 + $0xa8] sm:$0xff] %v404
    %458 = vst [vmem:[#allocation2 + $0xb0] sm:$0xff] %v407
    %459 = vst [vmem:[#allocation2 + $0xb8] sm:$0xff] %v410
    %460 = vst [vmem:[#allocation2 + $0xc0] sm:$0xff] %v413
    %461 = vst [vmem:[#allocation2 + $0xc8] sm:$0xff] %v416
    %462 = vst [vmem:[#allocation2 + $0xd0] sm:$0xff] %v419
    %463 = vst [vmem:[#allocation2 + $0xd8] sm:$0xff] %v422
    %464 = vst [vmem:[#allocation2 + $0xe0] sm:$0xff] %v425
    %465 = vst [vmem:[#allocation2 + $0xe8] sm:$0xff] %v428
    %466 = vst [vmem:[#allocation2 + $0xf0] sm:$0xff] %v431
    %467 = vst [vmem:[#allocation2 + $0xf8] sm:$0xff] %v434
    // Predicated region
    $region22: #{tpu_custom_call.1} parent=1 // pred_check
      _
    $region23: #{tpu_custom_call.1} parent=1 // pred_check_branch
      %469 = sbr.rel (0) target = $region25
    $region24: #{tpu_custom_call.1} parent=1 // pred_region
      %471 = vsyncadd [#allocation3], 0
      %s472 = sshll.u32 [#allocation2], 4
      %s473 = int_to_ptr.vmem [resolvable:$true] %s472
      %s474 = sshll.u32 %s5, 4
      %s475 = int_to_ptr.hbm [resolvable:$true] %s474
      %480 = dma.vmem_to_hbm [thread:$0]  %s473, 4096, %s475, [#allocation3], 128, 128, 8
    $region25: #{tpu_custom_call.1} parent=1 // pred_fallthru
      _
    // Predicated region
    $region26: #{tpu_custom_call.1} parent=1 // pred_check
      _
    $region27: #{tpu_custom_call.1} parent=1 // pred_check_branch
      %482 = sbr.rel (0) target = $region29
    $region28: #{tpu_custom_call.1} parent=1 // pred_region
      %484 = dma.done [#allocation3], 4096
    $region29: #{tpu_custom_call.1} parent=1 // pred_fallthru
      _
    %485 = vsyncpa [#allocation3], 1

</llo_original>
